<compile_context>
chip_gen: v7x
topology: tpu7x:2x2x1
jax: 0.10.0
libtpu: 0.0.40
codegen_flags: <defaults>
</compile_context>

<pallas_src>
import functools

import jax
import jax.numpy as jnp
from jax.experimental import pallas as pl
from jax.experimental.pallas import tpu as pltpu

# Hyper-parameters the PyTorch module pulled from the global `args` namespace:
# baked in as deterministic compile-time constants here.
BETA = 2.0        # args.beta
UM = 0.5          # args.UM  (flooding level)
CRITERION = None  # CustomLoss(criterion=None) -> flooding branch is taken


def _reference(outputs, labels, beta=BETA, um=UM, criterion=CRITERION):
    """Pure-JAX reference (also used as the tiny-shape fast path)."""
    logits = outputs.astype(jnp.float32)
    logp = jax.nn.log_softmax(logits, axis=-1)
    nll = -jnp.take_along_axis(
        logp, labels.astype(jnp.int32).reshape(-1, 1), axis=-1).mean()
    loss = beta * nll
    if criterion != "CrossEntropyLoss":
        loss = jnp.abs(loss - um) + um
    return loss


def _vmem_budget():
    """(per-step live-byte budget, vmem_limit_bytes) per TPU generation."""
    cap = 0
    try:
        info = pltpu.get_tpu_info()
        cap = int(getattr(info, "vmem_capacity_bytes", 0) or 0)
    except Exception:
        cap = 0
    if cap >= 96 * 1024 * 1024:          # v5e / v6e: 128 MiB physical VMEM
        return 32 * 1024 * 1024, 80 * 1024 * 1024
    # v7x (64 MiB physical, 32 MiB scoped default) or unknown chip: conservative.
    return 12 * 1024 * 1024, 32 * 1024 * 1024


def _ce_partial_kernel(logits_ref, labels_ref, psum_ref, m_ref, l_ref, picked_ref, *,
                       n_rows, c_total, full_tiles, total_row_tiles):
    """Online log-sum-exp CE over one (block_n, c_tile) chunk.

    Grid: (p, t, k) = (parallel row superblock, row tile, class chunk).
    logits_ref: (block_n, c_tile) native-dtype logits (VMEM)
    labels_ref: (block_n, 1) int32 class indices (VMEM)
    psum_ref  : (1, 1, 1) f32 accumulator, resident across (t, k) for each p.
    m/l/picked: (block_n, 1) f32 running max / rescaled sum(exp) / label logit.
    """
    p = pl.program_id(0)
    t = pl.program_id(1)
    k = pl.program_id(2)
    t_axis = pl.num_programs(1)
    c_chunks = pl.num_programs(2)

    block_n, c_tile = logits_ref.shape
    tile_idx = p * t_axis + t

    @pl.when(jnp.logical_and(t == 0, k == 0))
    def _init_psum():
        psum_ref[...] = jnp.zeros_like(psum_ref)

    @pl.when(k == 0)
    def _init_state():
        m_ref[...] = jnp.full_like(m_ref, -jnp.inf)
        l_ref[...] = jnp.zeros_like(l_ref)
        picked_ref[...] = jnp.zeros_like(picked_ref)

    x = logits_ref[...].astype(jnp.float32)                        # upcast in VMEM
    col = k * c_tile + jax.lax.broadcasted_iota(jnp.int32, (1, c_tile), 1)
    if c_total % c_tile != 0:
        # Ragged last class chunk: padded columns must not win the max / feed exp.
        x = jnp.where(col < c_total, x, -jnp.inf)

    labels = labels_ref[...]                                       # (bn, 1) int32
    m_prev = m_ref[...]
    m_new = jnp.maximum(m_prev, jnp.max(x, axis=-1, keepdims=True))
    l_ref[...] = (l_ref[...] * jnp.exp(m_prev - m_new)
                  + jnp.sum(jnp.exp(x - m_new), axis=-1, keepdims=True))
    # One-hot gather of the raw label logit (falls in exactly one chunk).
    # Note: out-of-range labels silently contribute picked=0 (same caveat as before).
    picked_ref[...] += jnp.sum(jnp.where(col == labels, x, 0.0),
                               axis=-1, keepdims=True)
    m_ref[...] = m_new

    is_last_chunk = k == c_chunks - 1

    # Fully-in-range row tiles: scalar reduce, no mask work at all.
    @pl.when(jnp.logical_and(is_last_chunk, tile_idx < full_tiles))
    def _acc_full():
        nll = m_ref[...] + jnp.log(l_ref[...]) - picked_ref[...]
        psum_ref[...] += jnp.sum(nll).reshape(1, 1, 1)

    if full_tiles < total_row_tiles:
        # Ragged last row tile and/or megacore overhang tile: select (not multiply)
        # so NaN/Inf in padded rows never reaches the sum.
        @pl.when(jnp.logical_and(is_last_chunk, tile_idx >= full_tiles))
        def _acc_ragged():
            nll = m_ref[...] + jnp.log(l_ref[...]) - picked_ref[...]
            row_ids = tile_idx * block_n + jax.lax.broadcasted_iota(
                jnp.int32, (block_n, 1), 0)
            psum_ref[...] += jnp.sum(
                jnp.where(row_ids < n_rows, nll, 0.0)).reshape(1, 1, 1)


def custom_loss(outputs, labels, *, beta=BETA, um=UM, criterion=CRITERION,
                block_n=None, c_block=None, use_pallas=None):
    """outputs: (N, C) float logits (any float dtype); labels: (N,) ints -> scalar f32."""
    n, c = outputs.shape
    apply_flood = criterion != "CrossEntropyLoss"

    # Tiny shapes: per-pallas_call overhead dwarfs the work -> fused XLA path.
    if use_pallas is None:
        use_pallas = (n * c) >= 32768 and n >= 8
    if not use_pallas or n < 8:
        return _reference(outputs, labels, beta=beta, um=um, criterion=criterion)

    itemsize = jnp.dtype(outputs.dtype).itemsize

    # --- class-axis chunk size (multiple of 128 lanes, or the full C) ---
    if c_block is not None and c_block < c:
        c_tile = min(c, max(128, (min(c_block, c) // 128) * 128))
    elif c <= 4096:
        c_tile = c
    else:
        c_tile = 2048
    c_chunks = -(-c // c_tile)

    # --- per-generation row-tile sizing (input double-buffer + f32 temporaries) ---
    tile_budget, vmem_limit = _vmem_budget()
    if block_n is None:
        per_row = 2 * c_tile * itemsize + 16 * c_tile + 64
        block_n = tile_budget // per_row
    block_n = int(max(8, min(block_n, 4096, (n // 8) * 8)))
    block_n = (block_n // 8) * 8

    num_tiles = -(-n // block_n)
    # Always keep the 2-way split when there is >1 tile (megacore on v7x; at most
    # one wasted, fully-masked overhang tile on 1-TC chips).
    p_axis = 2 if num_tiles >= 2 else 1
    t_axis = -(-num_tiles // p_axis)
    total_row_tiles = p_axis * t_axis
    full_tiles = n // block_n

    labels2d = labels.astype(jnp.int32).reshape(n, 1)

    def row_block(p, t, k):
        return (jnp.minimum(p * t_axis + t, num_tiles - 1), k)

    def label_block(p, t, k):
        return (jnp.minimum(p * t_axis + t, num_tiles - 1), 0)

    kernel = functools.partial(_ce_partial_kernel, n_rows=n, c_total=c,
                               full_tiles=full_tiles,
                               total_row_tiles=total_row_tiles)

    cost = pl.CostEstimate(
        flops=int(6 * n * c),
        transcendentals=int(n * c + 2 * n),
        bytes_accessed=int(n * c * itemsize + n * 4 * c_chunks + p_axis * 4),
    )

    partial_sums = pl.pallas_call(
        kernel,
        out_shape=jax.ShapeDtypeStruct((p_axis, 1, 1), jnp.float32),
        grid_spec=pltpu.PrefetchScalarGridSpec(
            num_scalar_prefetch=0,
            grid=(p_axis, t_axis, c_chunks),
            in_specs=[
                pl.BlockSpec((block_n, c_tile), row_block),   # logits chunk (native dtype)
                pl.BlockSpec((block_n, 1), label_block),      # labels tile
            ],
            out_specs=pl.BlockSpec((1, 1, 1), lambda p, t, k: (p, 0, 0)),
            scratch_shapes=[
                pltpu.VMEM((block_n, 1), jnp.float32),        # running max m
                pltpu.VMEM((block_n, 1), jnp.float32),        # running sum(exp) l
                pltpu.VMEM((block_n, 1), jnp.float32),        # picked label logit
            ],
        ),
        compiler_params=pltpu.CompilerParams(
            dimension_semantics=("parallel", "arbitrary", "arbitrary"),
            vmem_limit_bytes=vmem_limit,
        ),
        cost_estimate=cost,
    )(outputs, labels2d)

    # Finalize in the wrapper: sum of per-row NLL -> mean -> beta -> flooding.
    mean_nll = jnp.sum(partial_sums) * (1.0 / n)
    loss = beta * mean_nll
    if apply_flood:
        loss = jnp.abs(loss - um) + um
    return loss


if __name__ == "__main__":
    key = jax.random.PRNGKey(0)
    k1, k2, k3, k4, k5, k6 = jax.random.split(key, 6)

    # 1) bf16 logits: 4 row tiles (ragged tail, 200 % 64 != 0), 2-way parallel split,
    #    single class chunk. Exercises pipelining, tail masking, scalar accumulation.
    N, C = 200, 256
    logits = jax.random.normal(k1, (N, C), dtype=jnp.float32).astype(jnp.bfloat16)
    labels = jax.random.randint(k2, (N,), 0, C, dtype=jnp.int32)
    loss = jax.block_until_ready(custom_loss(logits, labels, use_pallas=True, block_n=64))
    ref = _reference(logits, labels)
    assert jnp.allclose(loss, ref, rtol=1e-3, atol=1e-3), (loss, ref)

    # 2) Class-axis online log-sum-exp: 4 chunks of 128 lanes, odd row-tile count
    #    (3 tiles -> one fully-masked overhang tile via the clamped index_map).
    N3, C3 = 72, 512
    logits3 = jax.random.normal(k3, (N3, C3), dtype=jnp.float32)
    labels3 = jax.random.randint(k4, (N3,), 0, C3, dtype=jnp.int32)
    loss3 = jax.block_until_ready(
        custom_loss(logits3, labels3, use_pallas=True, block_n=32, c_block=128))
    ref3 = _reference(logits3, labels3)
    assert jnp.allclose(loss3, ref3, rtol=1e-4, atol=1e-4), (loss3, ref3)

    # 3) Tiny shape: auto-dispatch falls back to the fused XLA path.
    n2, c2 = 8, 32
    logits2 = jax.random.normal(k5, (n2, c2), dtype=jnp.float32)
    labels2 = jax.random.randint(k6, (n2,), 0, c2, dtype=jnp.int32)
    loss2 = jax.block_until_ready(custom_loss(logits2, labels2))
    ref2 = _reference(logits2, labels2)
    assert jnp.allclose(loss2, ref2, rtol=1e-5, atol=1e-5), (loss2, ref2)

    print("KERNEL_OK")
</pallas_src>

<mosaic_0001>
module attributes {stable_mosaic.version = 11 : i64} {
  func.func @_ce_partial_kernel(%arg0: i32, %arg1: i32, %arg2: i32, %arg3: memref<64x256xbf16, #tpu.memory_space<vmem>>, %arg4: memref<64x1xi32, #tpu.memory_space<vmem>>, %arg5: memref<1x1x1xf32, #tpu.memory_space<vmem>>, %arg6: memref<64x1xf32, #tpu.memory_space<vmem>>, %arg7: memref<64x1xf32, #tpu.memory_space<vmem>>, %arg8: memref<64x1xf32, #tpu.memory_space<vmem>>) attributes {dimension_semantics = [#tpu.dimension_semantics<parallel>, #tpu.dimension_semantics<arbitrary>, #tpu.dimension_semantics<arbitrary>], iteration_bounds = array<i64: 2, 2, 1>, scalar_prefetch = 0 : i64, scratch_operands = 3 : i64, tpu.core_type = #tpu.core_type<tc>, window_params = [{transform_indices = @transform_0, window_bounds = array<i64: 64, 256>}, {transform_indices = @transform_1, window_bounds = array<i64: 64, 1>}, {transform_indices = @transform_2, window_bounds = array<i64: 1, 1, 1>}]} {
    %c2_i32 = arith.constant 2 : i32
    %0 = arith.muli %arg0, %c2_i32 : i32
    %1 = arith.addi %0, %arg1 : i32
    %c0_i32 = arith.constant 0 : i32
    %2 = arith.cmpi eq, %arg1, %c0_i32 : i32
    %c0_i32_0 = arith.constant 0 : i32
    %3 = arith.cmpi eq, %arg2, %c0_i32_0 : i32
    %4 = arith.andi %2, %3 : i1
    %5 = arith.extui %4 : i1 to i32
    %c0_i32_1 = arith.constant 0 : i32
    %6 = arith.cmpi ne, %5, %c0_i32_1 : i32
    scf.if %6 {
      %cst_26 = arith.constant 0.000000e+00 : f32
      %52 = vector.broadcast %cst_26 : f32 to vector<1x1x1xf32>
      %c0_27 = arith.constant 0 : index
      %c0_28 = arith.constant 0 : index
      %c0_29 = arith.constant 0 : index
      %53 = vector.load %arg5[%c0_27, %c0_28, %c0_29] : memref<1x1x1xf32, #tpu.memory_space<vmem>>, vector<1x1x1xf32>
      tpu.vector_store %arg5[%c0_27, %c0_28, %c0_29], %52 {strides = array<i32>} : memref<1x1x1xf32, #tpu.memory_space<vmem>>, vector<1x1x1xf32>,
    } else {
    }
    %c0_i32_2 = arith.constant 0 : i32
    %7 = arith.cmpi eq, %arg2, %c0_i32_2 : i32
    %8 = arith.extui %7 : i1 to i32
    %c0_i32_3 = arith.constant 0 : i32
    %9 = arith.cmpi ne, %8, %c0_i32_3 : i32
    scf.if %9 {
      %cst_26 = arith.constant 0xFF800000 : f32
      %52 = vector.broadcast %cst_26 : f32 to vector<64x1xf32>
      %c0_27 = arith.constant 0 : index
      %c0_28 = arith.constant 0 : index
      %53 = vector.load %arg6[%c0_27, %c0_28] : memref<64x1xf32, #tpu.memory_space<vmem>>, vector<64x1xf32>
      tpu.vector_store %arg6[%c0_27, %c0_28], %52 {strides = array<i32>} : memref<64x1xf32, #tpu.memory_space<vmem>>, vector<64x1xf32>,
      %cst_29 = arith.constant 0.000000e+00 : f32
      %54 = vector.broadcast %cst_29 : f32 to vector<64x1xf32>
      %c0_30 = arith.constant 0 : index
      %c0_31 = arith.constant 0 : index
      %55 = vector.load %arg7[%c0_30, %c0_31] : memref<64x1xf32, #tpu.memory_space<vmem>>, vector<64x1xf32>
      tpu.vector_store %arg7[%c0_30, %c0_31], %54 {strides = array<i32>} : memref<64x1xf32, #tpu.memory_space<vmem>>, vector<64x1xf32>,
      %cst_32 = arith.constant 0.000000e+00 : f32
      %56 = vector.broadcast %cst_32 : f32 to vector<64x1xf32>
      %c0_33 = arith.constant 0 : index
      %c0_34 = arith.constant 0 : index
      %57 = vector.load %arg8[%c0_33, %c0_34] : memref<64x1xf32, #tpu.memory_space<vmem>>, vector<64x1xf32>
      tpu.vector_store %arg8[%c0_33, %c0_34], %56 {strides = array<i32>} : memref<64x1xf32, #tpu.memory_space<vmem>>, vector<64x1xf32>,
    } else {
    }
    %c0 = arith.constant 0 : index
    %c0_4 = arith.constant 0 : index
    %10 = vector.load %arg3[%c0, %c0_4] : memref<64x256xbf16, #tpu.memory_space<vmem>>, vector<64x256xbf16>
    %11 = arith.extf %10 : vector<64x256xbf16> to vector<64x256xf32>
    %c256_i32 = arith.constant 256 : i32
    %12 = arith.muli %arg2, %c256_i32 : i32
    %13 = tpu.iota {dimensions = array<i32: 1>} : vector<1x256xi32>
    %14 = vector.broadcast %12 : i32 to vector<1x256xi32>
    %15 = arith.addi %14, %13 : vector<1x256xi32>
    %c0_5 = arith.constant 0 : index
    %c0_6 = arith.constant 0 : index
    %16 = vector.load %arg4[%c0_5, %c0_6] : memref<64x1xi32, #tpu.memory_space<vmem>>, vector<64x1xi32>
    %c0_7 = arith.constant 0 : index
    %c0_8 = arith.constant 0 : index
    %17 = vector.load %arg6[%c0_7, %c0_8] : memref<64x1xf32, #tpu.memory_space<vmem>>, vector<64x1xf32>
    %cst = arith.constant dense<0xFF800000> : vector<64xf32>
    %18 = vector.multi_reduction <maximumf>, %11, %cst [1] : vector<64x256xf32> to vector<64xf32>
    %19 = vector.shape_cast %18 : vector<64xf32> to vector<64x1xf32>
    %20 = arith.maximumf %17, %19 : vector<64x1xf32>
    %c0_9 = arith.constant 0 : index
    %c0_10 = arith.constant 0 : index
    %21 = vector.load %arg7[%c0_9, %c0_10] : memref<64x1xf32, #tpu.memory_space<vmem>>, vector<64x1xf32>
    %22 = arith.subf %17, %20 : vector<64x1xf32>
    %23 = math.exp %22 : vector<64x1xf32>
    %24 = arith.mulf %21, %23 : vector<64x1xf32>
    %25 = vector.broadcast %20 : vector<64x1xf32> to vector<64x256xf32>
    %26 = arith.subf %11, %25 : vector<64x256xf32>
    %27 = math.exp %26 : vector<64x256xf32>
    %cst_11 = arith.constant dense<0.000000e+00> : vector<64xf32>
    %28 = vector.multi_reduction <add>, %27, %cst_11 [1] : vector<64x256xf32> to vector<64xf32>
    %29 = vector.shape_cast %28 : vector<64xf32> to vector<64x1xf32>
    %30 = arith.addf %24, %29 : vector<64x1xf32>
    %c0_12 = arith.constant 0 : index
    %c0_13 = arith.constant 0 : index
    %31 = vector.load %arg7[%c0_12, %c0_13] : memref<64x1xf32, #tpu.memory_space<vmem>>, vector<64x1xf32>
    tpu.vector_store %arg7[%c0_12, %c0_13], %30 {strides = array<i32>} : memref<64x1xf32, #tpu.memory_space<vmem>>, vector<64x1xf32>,
    %c0_14 = arith.constant 0 : index
    %c0_15 = arith.constant 0 : index
    %32 = vector.load %arg8[%c0_14, %c0_15] : memref<64x1xf32, #tpu.memory_space<vmem>>, vector<64x1xf32>
    %33 = vector.broadcast %15 : vector<1x256xi32> to vector<64x256xi32>
    %34 = vector.broadcast %16 : vector<64x1xi32> to vector<64x256xi32>
    %35 = arith.cmpi eq, %33, %34 : vector<64x256xi32>
    %cst_16 = arith.constant 0.000000e+00 : f32
    %36 = vector.broadcast %cst_16 : f32 to vector<64x256xf32>
    %37 = arith.select %35, %11, %36 : vector<64x256xi1>, vector<64x256xf32>
    %cst_17 = arith.constant dense<0.000000e+00> : vector<64xf32>
    %38 = vector.multi_reduction <add>, %37, %cst_17 [1] : vector<64x256xf32> to vector<64xf32>
    %39 = vector.shape_cast %38 : vector<64xf32> to vector<64x1xf32>
    %40 = arith.addf %32, %39 : vector<64x1xf32>
    %c0_18 = arith.constant 0 : index
    %c0_19 = arith.constant 0 : index
    %41 = vector.load %arg8[%c0_18, %c0_19] : memref<64x1xf32, #tpu.memory_space<vmem>>, vector<64x1xf32>
    tpu.vector_store %arg8[%c0_18, %c0_19], %40 {strides = array<i32>} : memref<64x1xf32, #tpu.memory_space<vmem>>, vector<64x1xf32>,
    %c0_20 = arith.constant 0 : index
    %c0_21 = arith.constant 0 : index
    %42 = vector.load %arg6[%c0_20, %c0_21] : memref<64x1xf32, #tpu.memory_space<vmem>>, vector<64x1xf32>
    tpu.vector_store %arg6[%c0_20, %c0_21], %20 {strides = array<i32>} : memref<64x1xf32, #tpu.memory_space<vmem>>, vector<64x1xf32>,
    %c0_i32_22 = arith.constant 0 : i32
    %43 = arith.cmpi eq, %arg2, %c0_i32_22 : i32
    %c3_i32 = arith.constant 3 : i32
    %44 = arith.cmpi slt, %1, %c3_i32 : i32
    %45 = arith.andi %43, %44 : i1
    %46 = arith.extui %45 : i1 to i32
    %c0_i32_23 = arith.constant 0 : i32
    %47 = arith.cmpi ne, %46, %c0_i32_23 : i32
    scf.if %47 {
      %c0_26 = arith.constant 0 : index
      %c0_27 = arith.constant 0 : index
      %52 = vector.load %arg6[%c0_26, %c0_27] : memref<64x1xf32, #tpu.memory_space<vmem>>, vector<64x1xf32>
      %c0_28 = arith.constant 0 : index
      %c0_29 = arith.constant 0 : index
      %53 = vector.load %arg7[%c0_28, %c0_29] : memref<64x1xf32, #tpu.memory_space<vmem>>, vector<64x1xf32>
      %54 = math.log %53 : vector<64x1xf32>
      %55 = arith.addf %52, %54 : vector<64x1xf32>
      %c0_30 = arith.constant 0 : index
      %c0_31 = arith.constant 0 : index
      %56 = vector.load %arg8[%c0_30, %c0_31] : memref<64x1xf32, #tpu.memory_space<vmem>>, vector<64x1xf32>
      %57 = arith.subf %55, %56 : vector<64x1xf32>
      %c0_32 = arith.constant 0 : index
      %c0_33 = arith.constant 0 : index
      %c0_34 = arith.constant 0 : index
      %58 = vector.load %arg5[%c0_32, %c0_33, %c0_34] : memref<1x1x1xf32, #tpu.memory_space<vmem>>, vector<1x1x1xf32>
      %59 = vector.shape_cast %57 : vector<64x1xf32> to vector<1x64x1xf32>
      %cst_35 = arith.constant dense<0.000000e+00> : vector<1xf32>
      %60 = vector.multi_reduction <add>, %59, %cst_35 [1, 2] : vector<1x64x1xf32> to vector<1xf32>
      %61 = vector.shape_cast %60 : vector<1xf32> to vector<1x1x1xf32>
      %62 = vector.extract %61[0, 0, 0] : f32 from vector<1x1x1xf32>
      %63 = vector.broadcast %62 : f32 to vector<1x1x1xf32>
      %64 = arith.addf %58, %63 : vector<1x1x1xf32>
      %c0_36 = arith.constant 0 : index
      %c0_37 = arith.constant 0 : index
      %c0_38 = arith.constant 0 : index
      %65 = vector.load %arg5[%c0_36, %c0_37, %c0_38] : memref<1x1x1xf32, #tpu.memory_space<vmem>>, vector<1x1x1xf32>
      tpu.vector_store %arg5[%c0_36, %c0_37, %c0_38], %64 {strides = array<i32>} : memref<1x1x1xf32, #tpu.memory_space<vmem>>, vector<1x1x1xf32>,
    } else {
    }
    %c3_i32_24 = arith.constant 3 : i32
    %48 = arith.cmpi sge, %1, %c3_i32_24 : i32
    %49 = arith.andi %43, %48 : i1
    %50 = arith.extui %49 : i1 to i32
    %c0_i32_25 = arith.constant 0 : i32
    %51 = arith.cmpi ne, %50, %c0_i32_25 : i32
    scf.if %51 {
      %c0_26 = arith.constant 0 : index
      %c0_27 = arith.constant 0 : index
      %52 = vector.load %arg6[%c0_26, %c0_27] : memref<64x1xf32, #tpu.memory_space<vmem>>, vector<64x1xf32>
      %c0_28 = arith.constant 0 : index
      %c0_29 = arith.constant 0 : index
      %53 = vector.load %arg7[%c0_28, %c0_29] : memref<64x1xf32, #tpu.memory_space<vmem>>, vector<64x1xf32>
      %54 = math.log %53 : vector<64x1xf32>
      %55 = arith.addf %52, %54 : vector<64x1xf32>
      %c0_30 = arith.constant 0 : index
      %c0_31 = arith.constant 0 : index
      %56 = vector.load %arg8[%c0_30, %c0_31] : memref<64x1xf32, #tpu.memory_space<vmem>>, vector<64x1xf32>
      %57 = arith.subf %55, %56 : vector<64x1xf32>
      %c64_i32 = arith.constant 64 : i32
      %58 = arith.muli %1, %c64_i32 : i32
      %59 = tpu.iota {dimensions = array<i32: 0>} : vector<64x1xi32>
      %60 = vector.broadcast %58 : i32 to vector<64x1xi32>
      %61 = arith.addi %60, %59 : vector<64x1xi32>
      %c0_32 = arith.constant 0 : index
      %c0_33 = arith.constant 0 : index
      %c0_34 = arith.constant 0 : index
      %62 = vector.load %arg5[%c0_32, %c0_33, %c0_34] : memref<1x1x1xf32, #tpu.memory_space<vmem>>, vector<1x1x1xf32>
      %c200_i32 = arith.constant 200 : i32
      %63 = vector.broadcast %c200_i32 : i32 to vector<64x1xi32>
      %64 = arith.cmpi slt, %61, %63 : vector<64x1xi32>
      %cst_35 = arith.constant 0.000000e+00 : f32
      %65 = vector.broadcast %cst_35 : f32 to vector<64x1xf32>
      %66 = arith.select %64, %57, %65 : vector<64x1xi1>, vector<64x1xf32>
      %67 = vector.shape_cast %66 : vector<64x1xf32> to vector<1x64x1xf32>
      %cst_36 = arith.constant dense<0.000000e+00> : vector<1xf32>
      %68 = vector.multi_reduction <add>, %67, %cst_36 [1, 2] : vector<1x64x1xf32> to vector<1xf32>
      %69 = vector.shape_cast %68 : vector<1xf32> to vector<1x1x1xf32>
      %70 = vector.extract %69[0, 0, 0] : f32 from vector<1x1x1xf32>
      %71 = vector.broadcast %70 : f32 to vector<1x1x1xf32>
      %72 = arith.addf %62, %71 : vector<1x1x1xf32>
      %c0_37 = arith.constant 0 : index
      %c0_38 = arith.constant 0 : index
      %c0_39 = arith.constant 0 : index
      %73 = vector.load %arg5[%c0_37, %c0_38, %c0_39] : memref<1x1x1xf32, #tpu.memory_space<vmem>>, vector<1x1x1xf32>
      tpu.vector_store %arg5[%c0_37, %c0_38, %c0_39], %72 {strides = array<i32>} : memref<1x1x1xf32, #tpu.memory_space<vmem>>, vector<1x1x1xf32>,
    } else {
    }
    return
  }
  func.func @transform_0(%arg0: i32, %arg1: i32, %arg2: i32) -> (i32, i32) {
    %c2_i32 = arith.constant 2 : i32
    %0 = arith.muli %arg0, %c2_i32 : i32
    %1 = arith.addi %0, %arg1 : i32
    %c3_i32 = arith.constant 3 : i32
    %2 = arith.minsi %1, %c3_i32 : i32
    %c0_i32 = arith.constant 0 : i32
    return %2, %arg2 : i32, i32
  }
  func.func @transform_1(%arg0: i32, %arg1: i32, %arg2: i32) -> (i32, i32) {
    %c2_i32 = arith.constant 2 : i32
    %0 = arith.muli %arg0, %c2_i32 : i32
    %1 = arith.addi %0, %arg1 : i32
    %c3_i32 = arith.constant 3 : i32
    %2 = arith.minsi %1, %c3_i32 : i32
    %c0_i32 = arith.constant 0 : i32
    %c0_i32_0 = arith.constant 0 : i32
    return %2, %c0_i32 : i32, i32
  }
  func.func @transform_2(%arg0: i32, %arg1: i32, %arg2: i32) -> (i32, i32, i32) {
    %c0_i32 = arith.constant 0 : i32
    %c0_i32_0 = arith.constant 0 : i32
    %c0_i32_1 = arith.constant 0 : i32
    return %arg0, %c0_i32, %c0_i32_0 : i32, i32, i32
  }
}

</mosaic_0001>

<llo_original>
// kernel: tpu_custom_call.1
$region0: #{tpu_custom_call.1}
  #allocation0 [shape = 'u32[]', space=smem, size = 0x4, offset = 0x4, fixed_abs, tag = 'smem constant byte address 0x4 - core index']
  #allocation1 [shape = 'u32[144,128]{1,0:T(1,128)}', space=vmem, size = 0x12000, scoped, tag = 'internal scratch']
  #allocation2 [shape = 'f32[64,1]{1,0:T(8,128)}', space=vmem, size = 0x8000, scoped, tag = 'scratch operand']
  #allocation3 [shape = 'f32[64,1]{1,0:T(8,128)}', space=vmem, size = 0x8000, scoped, tag = 'scratch operand']
  #allocation4 [shape = 'f32[64,1]{1,0:T(8,128)}', space=vmem, size = 0x8000, scoped, tag = 'scratch operand']
  %s0 = inlined_call_operand.vmem [shape: bf16[200,256], index: 0, kind: input, shape index: {}]
  %s1 = inlined_call_operand.vmem [shape: s32[200,1], index: 1, kind: input, shape index: {}]
  %s2 = inlined_call_operand.vmem [shape: f32[2,1,1], index: 2, kind: output, shape index: {}]
  %s3 = sld [smem:[#allocation0]]
  $region57: #{tpu_custom_call.1} parent=0
    _
  %s5 = ssub.s32 1, %s3
  %s6 = scalar_select 0, %s5, %s3
  loop: start=0, step=1, limit=6
  $region2: #{tpu_custom_call.1} parent=0 // loop_pre_header
    _
  $region3: #{tpu_custom_call.1} parent=0 // loop_header
    %s8 = sphi 0, %s12
    %p9 = scmp.ge.s32.totalorder %s8, 6
    %s15 = sphi 0, %s34
    %s16 = sphi 0, %s30
    %s17 = sphi 0, %s26
    %s18 = sphi 0, %s15
    %s19 = sphi 0, %s16
    %s20 = sphi 0, %s17
    %s21 = sphi 0, %s18
    %s22 = sphi 0, %s19
    %s23 = sphi 0, %s20
    %s47 = sphi 0, %s49
    %s50 = sphi 0, %s47
    %s51 = sphi 0, %s50
    %s67 = sphi 0, %s51
    %s81 = sphi 0, %s83
    %s84 = sphi 0, %s81
    %s85 = sphi 0, %s84
    %s101 = sphi 0, %s85
    %s107 = sphi 0, %s109
    %s110 = sphi 0, %s107
    %s111 = sphi 0, %s110
    %s127 = sphi 0, %s111
  $region4: #{tpu_custom_call.1} parent=0 // loop_header_branch
    %11 = sbr.rel (%p9) target = $region8
  $region5: #{tpu_custom_call.1} parent=0 // loop_body
    %s13 = ssub.s32 %s8, 1
    %s14 = ssub.s32 %s8, 2
    %s24 = sadd.s32 1, %s17
    %p25 = scmp.ge.s32.totalorder %s24, 1
    %s26 = scalar_select %p25, 0, %s24
    %s27 = sadd.s32 1, %s16
    %s28 = scalar_select %p25, %s27, %s16
    %p29 = scmp.ge.s32.totalorder %s28, 2
    %s30 = scalar_select %p29, 0, %s28
    %s31 = sadd.s32 1, %s15
    %s32 = scalar_select %p29, %s31, %s15
    %p33 = scmp.ge.s32.totalorder %s32, 2
    %s34 = scalar_select %p33, 0, %s32
    %s35 = smul.u32 %s15, 2
    %s36 = sadd.s32 %s35, %s16
    %p37 = scmp.lt.s32.totalorder %s36, 3
    %s38 = scalar_select %p37, %s36, 3
    %s39 = smul.u32 %s34, 2
    %s40 = sadd.s32 %s39, %s30
    %p41 = scmp.lt.s32.totalorder %s40, 3
    %s42 = scalar_select %p41, %s40, 3
    %s43 = ssub.s32 %s38, %s42
    %s44 = ssub.s32 %s17, %s26
    %s45 = sor.u32 %s43, %s44
    %p46 = scmp.eq.s32.totalorder %s45, 0
    %s48 = sadd.s32 %s47, 1
    %s49 = scalar_select %p46, %s47, %s48
    %p52 = pneg %p46
    %p53 = scmp.eq.s32.totalorder %s8, 3
    %p54 = por %p52, %p53
    %p55 = scmp.ne.s32.totalorder %s47, %s50
    %p56 = scmp.eq.s32.totalorder %s8, 0
    %p57 = por %p55, %p56
    %p58 = scmp.ne.s32.totalorder %s47, %s50
    %p59 = scmp.eq.s32.totalorder %s13, 3
    %p60 = por %p58, %p59
    %p61 = scmp.ne.s32.totalorder %s50, %s51
    %p62 = scmp.eq.s32.totalorder %s13, 0
    %p63 = por %p61, %p62
    %p64 = scmp.ne.s32.totalorder %s50, %s51
    %p65 = scmp.eq.s32.totalorder %s14, 3
    %p66 = por %p64, %p65
    %p68 = scmp.ne.s32.totalorder %s51, %s67
    %p69 = scmp.eq.s32.totalorder %s14, 0
    %p70 = por %p68, %p69
    %s71 = smul.u32 %s15, 2
    %s72 = sadd.s32 %s71, %s16
    %p73 = scmp.lt.s32.totalorder %s72, 3
    %s74 = scalar_select %p73, %s72, 3
    %s75 = smul.u32 %s34, 2
    %s76 = sadd.s32 %s75, %s30
    %p77 = scmp.lt.s32.totalorder %s76, 3
    %s78 = scalar_select %p77, %s76, 3
    %s79 = ssub.s32 %s74, %s78
    %p80 = scmp.eq.s32.totalorder %s79, 0
    %s82 = sadd.s32 %s81, 1
    %s83 = scalar_select %p80, %s81, %s82
    %p86 = pneg %p80
    %p87 = scmp.eq.s32.totalorder %s8, 3
    %p88 = por %p86, %p87
    %p89 = scmp.ne.s32.totalorder %s81, %s84
    %p90 = scmp.eq.s32.totalorder %s8, 0
    %p91 = por %p89, %p90
    %p92 = scmp.ne.s32.totalorder %s81, %s84
    %p93 = scmp.eq.s32.totalorder %s13, 3
    %p94 = por %p92, %p93
    %p95 = scmp.ne.s32.totalorder %s84, %s85
    %p96 = scmp.eq.s32.totalorder %s13, 0
    %p97 = por %p95, %p96
    %p98 = scmp.ne.s32.totalorder %s84, %s85
    %p99 = scmp.eq.s32.totalorder %s14, 3
    %p100 = por %p98, %p99
    %p102 = scmp.ne.s32.totalorder %s85, %s101
    %p103 = scmp.eq.s32.totalorder %s14, 0
    %p104 = por %p102, %p103
    %s105 = ssub.s32 %s15, %s34
    %p106 = scmp.eq.s32.totalorder %s105, 0
    %s108 = sadd.s32 %s107, 1
    %s109 = scalar_select %p106, %s107, %s108
    %p112 = pneg %p106
    %p113 = scmp.eq.s32.totalorder %s8, 3
    %p114 = por %p112, %p113
    %p115 = scmp.ne.s32.totalorder %s107, %s110
    %p116 = scmp.eq.s32.totalorder %s8, 0
    %p117 = por %p115, %p116
    %p118 = scmp.ne.s32.totalorder %s107, %s110
    %p119 = scmp.eq.s32.totalorder %s13, 3
    %p120 = por %p118, %p119
    %p121 = scmp.ne.s32.totalorder %s110, %s111
    %p122 = scmp.eq.s32.totalorder %s13, 0
    %p123 = por %p121, %p122
    %p124 = scmp.ne.s32.totalorder %s110, %s111
    %p125 = scmp.eq.s32.totalorder %s14, 3
    %p126 = por %p124, %p125
    %p128 = scmp.ne.s32.totalorder %s111, %s127
    %p129 = scmp.eq.s32.totalorder %s14, 0
    %p130 = por %p128, %p129
    %p131 = scmp.le.s32.totalorder 1, %s8
    %p132 = scmp.lt.s32.totalorder %s8, 5
    %p133 = pnand %p131, %p132
    %p134 = pneg %p133
    // Predicated region
    $region9: #{tpu_custom_call.1} parent=5 // pred_check
      _
    $region10: #{tpu_custom_call.1} parent=5 // pred_check_branch
      %136 = sbr.rel (%p133) target = $region12
    $region11: #{tpu_custom_call.1} parent=5 // pred_region
      %s137 = ssub.s32 %s8, 1
    $region12: #{tpu_custom_call.1} parent=5 // pred_fallthru
      _
    %p138 = scmp.lt.s32.totalorder %s8, 4
    // Predicated region
    $region13: #{tpu_custom_call.1} parent=5 // pred_check
      %p139 = pneg %p138
    $region14: #{tpu_custom_call.1} parent=5 // pred_check_branch
      %141 = sbr.rel (%p139) target = $region16
    $region15: #{tpu_custom_call.1} parent=5 // pred_region
      // Predicated region
      $region17: #{tpu_custom_call.1} parent=15 // pred_check
        %p142 = pneg %p57
      $region18: #{tpu_custom_call.1} parent=15 // pred_check_branch
        %144 = sbr.rel (%p142) target = $region20
      $region19: #{tpu_custom_call.1} parent=15 // pred_region
        %s145 = smul.u32 %s15, 2
        %s146 = sadd.s32 %s145, %s16
        %p147 = scmp.lt.s32.totalorder %s146, 3
        %s148 = scalar_select %p147, %s146, 3
        %s149 = smul.u32 8, %s148
        %s150 = smul.u32 2, %s17
        %s151 = ssub.s32 25, %s149
        %p152 = scmp.lt.s32.totalorder %s151, 8
        %s153 = scalar_select %p152, %s151, 8
        %s154 = smul.u32 64, %s153
        %s155 = smul.u32 %s154, 2
        %p156 = scmp.lt.s32.totalorder %s149, 24
        %s157 = scalar_select %p156, %s149, 24
        %p158 = scmp.lt.s32.totalorder %s150, 1
        %s159 = scalar_select %p158, %s150, 1
        %s160 = smul.addr %s157, 2
        %s161 = sadd.s32 %s159, %s160
        %s162 = smul.addr %s161, 4
        %s163 = scalar_lea.vmem %s0, %s162
        %s164 = smul.u32 %s15, 2
        %s165 = sadd.s32 %s164, %s16
        %p166 = scmp.lt.s32.totalorder %s165, 3
        %s167 = scalar_select %p166, %s165, 3
        %s168 = smul.u32 8, %s167
        %s169 = smul.u32 2, %s17
        %s170 = ssub.s32 25, %s168
        %p171 = scmp.lt.s32.totalorder %s170, 8
        %s172 = scalar_select %p171, %s170, 8
        %s173 = smul.u32 64, %s172
        %s174 = smul.u32 %s173, 2
      $region20: #{tpu_custom_call.1} parent=15 // pred_fallthru
        _
      // Predicated region
      $region21: #{tpu_custom_call.1} parent=15 // pred_check
        %p175 = pneg %p91
      $region22: #{tpu_custom_call.1} parent=15 // pred_check_branch
        %177 = sbr.rel (%p175) target = $region24
      $region23: #{tpu_custom_call.1} parent=15 // pred_region
        %s178 = smul.u32 %s15, 2
        %s179 = sadd.s32 %s178, %s16
        %p180 = scmp.lt.s32.totalorder %s179, 3
        %s181 = scalar_select %p180, %s179, 3
        %s182 = smul.u32 8, %s181
        %s183 = ssub.s32 25, %s182
        %p184 = scmp.lt.s32.totalorder %s183, 8
        %s185 = scalar_select %p184, %s183, 8
        %s186 = smul.u32 128, %s185
        %p187 = scmp.lt.s32.totalorder %s182, 24
        %s188 = scalar_select %p187, %s182, 24
        %s189 = smul.addr %s188, 8
        %s190 = scalar_lea.vmem %s1, %s189
        %s191 = smul.u32 %s15, 2
        %s192 = sadd.s32 %s191, %s16
        %p193 = scmp.lt.s32.totalorder %s192, 3
        %s194 = scalar_select %p193, %s192, 3
        %s195 = smul.u32 8, %s194
        %s196 = ssub.s32 25, %s195
        %p197 = scmp.lt.s32.totalorder %s196, 8
        %s198 = scalar_select %p197, %s196, 8
        %s199 = smul.u32 128, %s198
      $region24: #{tpu_custom_call.1} parent=15 // pred_fallthru
        _
    $region16: #{tpu_custom_call.1} parent=5 // pred_fallthru
      _
    %p200 = scmp.le.s32.totalorder 1, %s8
    %p201 = scmp.lt.s32.totalorder %s8, 5
    %p202 = pnand %p200, %p201
    %p203 = pneg %p202
    // Predicated region
    $region25: #{tpu_custom_call.1} parent=5 // pred_check
      _
    $region26: #{tpu_custom_call.1} parent=5 // pred_check_branch
      %205 = sbr.rel (%p202) target = $region28
    $region27: #{tpu_custom_call.1} parent=5 // pred_region
      %s206 = ssub.s32 %s8, 1
      %s207 = smul.u32 %s18, 2
      %s208 = sadd.s32 %s207, %s19
      %p209 = scmp.lt.s32.totalorder %s208, 3
      %s210 = scalar_select %p209, %s208, 3
      %s211 = smul.u32 8, %s210
      %s212 = smul.u32 2, %s20
      %s213 = ssub.s32 25, %s211
      %p214 = scmp.lt.s32.totalorder %s213, 8
      %s215 = scalar_select %p214, %s213, 8
      %s216 = smul.u32 64, %s215
      %s217 = smul.u32 %s216, 2
      %p218 = scmp.lt.s32.totalorder %s211, 24
      %s219 = scalar_select %p218, %s211, 24
      %p220 = scmp.lt.s32.totalorder %s212, 1
      %s221 = scalar_select %p220, %s212, 1
      %s222 = smul.addr %s219, 2
      %s223 = sadd.s32 %s221, %s222
      %s224 = smul.addr %s223, 4
      %s225 = scalar_lea.vmem %s0, %s224
      %p226 = pneg %p63
      %p227 = pneg %p60
      %s228 = smul.u32 %s18, 2
      %s229 = sadd.s32 %s228, %s19
      %p230 = scmp.lt.s32.totalorder %s229, 3
      %s231 = scalar_select %p230, %s229, 3
      %s232 = smul.u32 8, %s231
      %s233 = ssub.s32 25, %s232
      %p234 = scmp.lt.s32.totalorder %s233, 8
      %s235 = scalar_select %p234, %s233, 8
      %s236 = smul.u32 128, %s235
      %p237 = scmp.lt.s32.totalorder %s232, 24
      %s238 = scalar_select %p237, %s232, 24
      %s239 = smul.addr %s238, 8
      %s240 = scalar_lea.vmem %s1, %s239
      %p241 = pneg %p97
      %p242 = pneg %p94
      %p243 = pneg %p123
      %p244 = pneg %p120
      %p245 = scmp.lt.s32.totalorder %s18, 1
      %s246 = scalar_select %p245, %s18, 1
      %s247 = scalar_lea.vmem %s2, %s246
      %s248 = smul.u32 %s18, 2
      %s249 = sadd.s32 %s248, %s19
      %p250 = scmp.lt.s32.totalorder %s249, 3
      %s251 = scalar_select %p250, %s249, 3
      %s252 = smul.u32 8, %s251
      %s253 = smul.u32 2, %s20
      %s254 = ssub.s32 25, %s252
      %p255 = scmp.lt.s32.totalorder %s254, 8
      %s256 = scalar_select %p255, %s254, 8
      %s257 = smul.u32 64, %s256
      %s258 = smul.u32 %s257, 2
      %p259 = scmp.lt.s32.totalorder %s252, 24
      %s260 = scalar_select %p259, %s252, 24
      %p261 = scmp.lt.s32.totalorder %s253, 1
      %s262 = scalar_select %p261, %s253, 1
      %s263 = smul.addr %s260, 2
      %s264 = sadd.s32 %s262, %s263
      %s265 = smul.addr %s264, 4
      %s266 = scalar_lea.vmem %s0, %s265
      %s267 = smul.u32 %s18, 2
      %s268 = sadd.s32 %s267, %s19
      %p269 = scmp.lt.s32.totalorder %s268, 3
      %s270 = scalar_select %p269, %s268, 3
      %s271 = smul.u32 8, %s270
      %s272 = smul.u32 2, %s20
      %s273 = ssub.s32 25, %s271
      %p274 = scmp.lt.s32.totalorder %s273, 8
      %s275 = scalar_select %p274, %s273, 8
      %s276 = smul.u32 64, %s275
      %s277 = smul.u32 %s276, 2
      %s278 = smul.u32 %s18, 2
      %s279 = sadd.s32 %s278, %s19
      %p280 = scmp.lt.s32.totalorder %s279, 3
      %s281 = scalar_select %p280, %s279, 3
      %s282 = smul.u32 8, %s281
      %s283 = ssub.s32 25, %s282
      %p284 = scmp.lt.s32.totalorder %s283, 8
      %s285 = scalar_select %p284, %s283, 8
      %s286 = smul.u32 128, %s285
      %p287 = scmp.lt.s32.totalorder %s282, 24
      %s288 = scalar_select %p287, %s282, 24
      %s289 = smul.addr %s288, 8
      %s290 = scalar_lea.vmem %s1, %s289
      %s291 = smul.u32 %s18, 2
      %s292 = sadd.s32 %s291, %s19
      %p293 = scmp.lt.s32.totalorder %s292, 3
      %s294 = scalar_select %p293, %s292, 3
      %s295 = smul.u32 8, %s294
      %s296 = ssub.s32 25, %s295
      %p297 = scmp.lt.s32.totalorder %s296, 8
      %s298 = scalar_select %p297, %s296, 8
      %s299 = smul.u32 128, %s298
      %p300 = scmp.lt.s32.totalorder %s18, 1
      %s301 = scalar_select %p300, %s18, 1
      %s302 = scalar_lea.vmem %s2, %s301
      %s303 = smul.u32 %s18, 2
      %s304 = sadd.s32 %s303, %s19
      %p305 = scmp.eq.s32.totalorder %s19, 0
      %p306 = scmp.eq.s32.totalorder %s20, 0
      %p307 = pnand %p305, %p306
      %p308 = pneg %p307
      // Predicated region
      $region29: #{tpu_custom_call.1} parent=27 // pred_check
        _
      $region30: #{tpu_custom_call.1} parent=27 // pred_check_branch
        %310 = sbr.rel (%p307) target = $region32
      $region31: #{tpu_custom_call.1} parent=27 // pred_region
        %vm311 = vcmask 0
        %312 = vst.msk [vmem:[%s302] sm:$0x1] %vm311, 0.0
      $region32: #{tpu_custom_call.1} parent=27 // pred_fallthru
        _
      // Predicated region
      $region33: #{tpu_custom_call.1} parent=27 // pred_check
        %p313 = pneg %p306
      $region34: #{tpu_custom_call.1} parent=27 // pred_check_branch
        %315 = sbr.rel (%p313) target = $region36
      $region35: #{tpu_custom_call.1} parent=27 // pred_region
        %vm316 = vcmask 7168
        %317 = vst.msk [vmem:[#allocation2] sm:$0xff] %vm316, -inf
        %318 = vst.msk [vmem:[#allocation2 + $0x8] sm:$0xff] %vm316, -inf
        %319 = vst.msk [vmem:[#allocation2 + $0x10] sm:$0xff] %vm316, -inf
        %320 = vst.msk [vmem:[#allocation2 + $0x18] sm:$0xff] %vm316, -inf
        %321 = vst.msk [vmem:[#allocation2 + $0x20] sm:$0xff] %vm316, -inf
        %322 = vst.msk [vmem:[#allocation2 + $0x28] sm:$0xff] %vm316, -inf
        %323 = vst.msk [vmem:[#allocation2 + $0x30] sm:$0xff] %vm316, -inf
        %324 = vst.msk [vmem:[#allocation2 + $0x38] sm:$0xff] %vm316, -inf
        %325 = vst.msk [vmem:[#allocation3] sm:$0xff] %vm316, 0.0
        %326 = vst.msk [vmem:[#allocation3 + $0x8] sm:$0xff] %vm316, 0.0
        %327 = vst.msk [vmem:[#allocation3 + $0x10] sm:$0xff] %vm316, 0.0
        %328 = vst.msk [vmem:[#allocation3 + $0x18] sm:$0xff] %vm316, 0.0
        %329 = vst.msk [vmem:[#allocation3 + $0x20] sm:$0xff] %vm316, 0.0
        %330 = vst.msk [vmem:[#allocation3 + $0x28] sm:$0xff] %vm316, 0.0
        %331 = vst.msk [vmem:[#allocation3 + $0x30] sm:$0xff] %vm316, 0.0
        %332 = vst.msk [vmem:[#allocation3 + $0x38] sm:$0xff] %vm316, 0.0
        %333 = vst.msk [vmem:[#allocation4] sm:$0xff] %vm316, 0.0
        %334 = vst.msk [vmem:[#allocation4 + $0x8] sm:$0xff] %vm316, 0.0
        %335 = vst.msk [vmem:[#allocation4 + $0x10] sm:$0xff] %vm316, 0.0
        %336 = vst.msk [vmem:[#allocation4 + $0x18] sm:$0xff] %vm316, 0.0
        %337 = vst.msk [vmem:[#allocation4 + $0x20] sm:$0xff] %vm316, 0.0
        %338 = vst.msk [vmem:[#allocation4 + $0x28] sm:$0xff] %vm316, 0.0
        %339 = vst.msk [vmem:[#allocation4 + $0x30] sm:$0xff] %vm316, 0.0
        %340 = vst.msk [vmem:[#allocation4 + $0x38] sm:$0xff] %vm316, 0.0
      $region36: #{tpu_custom_call.1} parent=27 // pred_fallthru
        _
      %v341 = vld [vmem:[%s266] sm:$0xff]
      %v342 = vld [vmem:[%s266 + $0x8] sm:$0xff]
      %v343 = vld [vmem:[%s266 + $0x10] sm:$0xff]
      %v344 = vld [vmem:[%s266 + $0x18] sm:$0xff]
      %v345 = vld [vmem:[%s266 + $0x20] sm:$0xff]
      %v346 = vld [vmem:[%s266 + $0x28] sm:$0xff]
      %v347 = vld [vmem:[%s266 + $0x30] sm:$0xff]
      %v348 = vld [vmem:[%s266 + $0x38] sm:$0xff]
      %v349 = vunpack.c.l.bf16 %v341
      %v350 = vunpack.c.h.bf16 %v341
      %v351 = vunpack.c.l.bf16 %v342
      %v352 = vunpack.c.h.bf16 %v342
      %v353 = vunpack.c.l.bf16 %v343
      %v354 = vunpack.c.h.bf16 %v343
      %v355 = vunpack.c.l.bf16 %v344
      %v356 = vunpack.c.h.bf16 %v344
      %v357 = vunpack.c.l.bf16 %v345
      %v358 = vunpack.c.h.bf16 %v345
      %v359 = vunpack.c.l.bf16 %v346
      %v360 = vunpack.c.h.bf16 %v346
      %v361 = vunpack.c.l.bf16 %v347
      %v362 = vunpack.c.h.bf16 %v347
      %v363 = vunpack.c.l.bf16 %v348
      %v364 = vunpack.c.h.bf16 %v348
      %s365 = smul.u32 %s20, 256
      %v366 = vlaneseq
      %v367 = vand.u32 %v366, 127
      %v368 = vadd.s32 %v367, 128
      %v369 = vstv %s365
      %v370 = vadd.s32 %v369, %v367
      %v371 = vadd.s32 %v369, %v368
      %v372 = vld [vmem:[%s290] sm:$0xff]
      %v373 = vld [vmem:[%s290 + $0x8] sm:$0xff]
      %v374 = vld [vmem:[%s290 + $0x10] sm:$0xff]
      %v375 = vld [vmem:[%s290 + $0x18] sm:$0xff]
      %v376 = vld [vmem:[%s290 + $0x20] sm:$0xff]
      %v377 = vld [vmem:[%s290 + $0x28] sm:$0xff]
      %v378 = vld [vmem:[%s290 + $0x30] sm:$0xff]
      %v379 = vld [vmem:[%s290 + $0x38] sm:$0xff]
      %v380 = vld [vmem:[#allocation2] sm:$0xff]
      %v381 = vld [vmem:[#allocation2 + $0x8] sm:$0xff]
      %v382 = vld [vmem:[#allocation2 + $0x10] sm:$0xff]
      %v383 = vld [vmem:[#allocation2 + $0x18] sm:$0xff]
      %v384 = vld [vmem:[#allocation2 + $0x20] sm:$0xff]
      %v385 = vld [vmem:[#allocation2 + $0x28] sm:$0xff]
      %v386 = vld [vmem:[#allocation2 + $0x30] sm:$0xff]
      %v387 = vld [vmem:[#allocation2 + $0x38] sm:$0xff]
      %v388 = vmax.f32 %v349, %v350
      %389 = vmax.xlane.f32.xlu0 %v388
      %v390 = vpop.xlane.xlu0 %389
      %v391 = vmax.f32 %v351, %v352
      %392 = vmax.xlane.f32.xlu0 %v391
      %v393 = vpop.xlane.xlu0 %392
      %v394 = vmax.f32 %v353, %v354
      %395 = vmax.xlane.f32.xlu0 %v394
      %v396 = vpop.xlane.xlu0 %395
      %v397 = vmax.f32 %v355, %v356
      %398 = vmax.xlane.f32.xlu0 %v397
      %v399 = vpop.xlane.xlu0 %398
      %v400 = vmax.f32 %v357, %v358
      %401 = vmax.xlane.f32.xlu0 %v400
      %v402 = vpop.xlane.xlu0 %401
      %v403 = vmax.f32 %v359, %v360
      %404 = vmax.xlane.f32.xlu0 %v403
      %v405 = vpop.xlane.xlu0 %404
      %v406 = vmax.f32 %v361, %v362
      %407 = vmax.xlane.f32.xlu0 %v406
      %v408 = vpop.xlane.xlu0 %407
      %v409 = vmax.f32 %v363, %v364
      %410 = vmax.xlane.f32.xlu0 %v409
      %v411 = vpop.xlane.xlu0 %410
      %v412 = vmax.f32 %v380, %v390
      %v413 = vmax.f32 %v381, %v393
      %v414 = vmax.f32 %v382, %v396
      %v415 = vmax.f32 %v383, %v399
      %v416 = vmax.f32 %v384, %v402
      %v417 = vmax.f32 %v385, %v405
      %v418 = vmax.f32 %v386, %v408
      %v419 = vmax.f32 %v387, %v411
      %v420 = vld [vmem:[#allocation3] sm:$0xff]
      %v421 = vld [vmem:[#allocation3 + $0x8] sm:$0xff]
      %v422 = vld [vmem:[#allocation3 + $0x10] sm:$0xff]
      %v423 = vld [vmem:[#allocation3 + $0x18] sm:$0xff]
      %v424 = vld [vmem:[#allocation3 + $0x20] sm:$0xff]
      %v425 = vld [vmem:[#allocation3 + $0x28] sm:$0xff]
      %v426 = vld [vmem:[#allocation3 + $0x30] sm:$0xff]
      %v427 = vld [vmem:[#allocation3 + $0x38] sm:$0xff]
      %v428 = vsub.f32 %v380, %v412
      %v429 = vsub.f32 %v381, %v413
      %v430 = vsub.f32 %v382, %v414
      %v431 = vsub.f32 %v383, %v415
      %v432 = vsub.f32 %v384, %v416
      %v433 = vsub.f32 %v385, %v417
      %v434 = vsub.f32 %v386, %v418
      %v435 = vsub.f32 %v387, %v419
      %v436 = vmul.f32 %v428, 1.442695
      %v437 = vpow.pop %v436
      %v438 = vmul.f32 %v429, 1.442695
      %v439 = vpow.pop %v438
      %v440 = vmul.f32 %v430, 1.442695
      %v441 = vpow.pop %v440
      %v442 = vmul.f32 %v431, 1.442695
      %v443 = vpow.pop %v442
      %v444 = vmul.f32 %v432, 1.442695
      %v445 = vpow.pop %v444
      %v446 = vmul.f32 %v433, 1.442695
      %v447 = vpow.pop %v446
      %v448 = vmul.f32 %v434, 1.442695
      %v449 = vpow.pop %v448
      %v450 = vmul.f32 %v435, 1.442695
      %v451 = vpow.pop %v450
      %v452 = vmul.f32 %v420, %v437
      %v453 = vmul.f32 %v421, %v439
      %v454 = vmul.f32 %v422, %v441
      %v455 = vmul.f32 %v423, %v443
      %v456 = vmul.f32 %v424, %v445
      %v457 = vmul.f32 %v425, %v447
      %v458 = vmul.f32 %v426, %v449
      %v459 = vmul.f32 %v427, %v451
      %461 = vset.pattern.permute.xlu0 0
      %462 = vperm.xlu0 %461, %v412
      %v463 = vpop.permute.xlu0 %462
      %466 = vset.pattern.permute.xlu0 0
      %467 = vperm.xlu0 %466, %v413
      %v468 = vpop.permute.xlu0 %467
      %471 = vset.pattern.permute.xlu0 0
      %472 = vperm.xlu0 %471, %v414
      %v473 = vpop.permute.xlu0 %472
      %476 = vset.pattern.permute.xlu0 0
      %477 = vperm.xlu0 %476, %v415
      %v478 = vpop.permute.xlu0 %477
      %481 = vset.pattern.permute.xlu0 0
      %482 = vperm.xlu0 %481, %v416
      %v483 = vpop.permute.xlu0 %482
      %486 = vset.pattern.permute.xlu0 0
      %487 = vperm.xlu0 %486, %v417
      %v488 = vpop.permute.xlu0 %487
      %491 = vset.pattern.permute.xlu0 0
      %492 = vperm.xlu0 %491, %v418
      %v493 = vpop.permute.xlu0 %492
      %496 = vset.pattern.permute.xlu0 0
      %497 = vperm.xlu0 %496, %v419
      %v498 = vpop.permute.xlu0 %497
      %v500 = vsub.f32 %v349, %v463
      %v501 = vsub.f32 %v350, %v463
      %v502 = vsub.f32 %v351, %v468
      %v503 = vsub.f32 %v352, %v468
      %v504 = vsub.f32 %v353, %v473
      %v505 = vsub.f32 %v354, %v473
      %v506 = vsub.f32 %v355, %v478
      %v507 = vsub.f32 %v356, %v478
      %v508 = vsub.f32 %v357, %v483
      %v509 = vsub.f32 %v358, %v483
      %v510 = vsub.f32 %v359, %v488
      %v511 = vsub.f32 %v360, %v488
      %v512 = vsub.f32 %v361, %v493
      %v513 = vsub.f32 %v362, %v493
      %v514 = vsub.f32 %v363, %v498
      %v515 = vsub.f32 %v364, %v498
      %v516 = vmul.f32 %v500, 1.442695
      %v517 = vpow.pop %v516
      %v518 = vmul.f32 %v501, 1.442695
      %v519 = vpow.pop %v518
      %v520 = vmul.f32 %v502, 1.442695
      %v521 = vpow.pop %v520
      %v522 = vmul.f32 %v503, 1.442695
      %v523 = vpow.pop %v522
      %v524 = vmul.f32 %v504, 1.442695
      %v525 = vpow.pop %v524
      %v526 = vmul.f32 %v505, 1.442695
      %v527 = vpow.pop %v526
      %v528 = vmul.f32 %v506, 1.442695
      %v529 = vpow.pop %v528
      %v530 = vmul.f32 %v507, 1.442695
      %v531 = vpow.pop %v530
      %v532 = vmul.f32 %v508, 1.442695
      %v533 = vpow.pop %v532
      %v534 = vmul.f32 %v509, 1.442695
      %v535 = vpow.pop %v534
      %v536 = vmul.f32 %v510, 1.442695
      %v537 = vpow.pop %v536
      %v538 = vmul.f32 %v511, 1.442695
      %v539 = vpow.pop %v538
      %v540 = vmul.f32 %v512, 1.442695
      %v541 = vpow.pop %v540
      %v542 = vmul.f32 %v513, 1.442695
      %v543 = vpow.pop %v542
      %v544 = vmul.f32 %v514, 1.442695
      %v545 = vpow.pop %v544
      %v546 = vmul.f32 %v515, 1.442695
      %v547 = vpow.pop %v546
      %v548 = vadd.f32 %v517, %v519
      %549 = vadd.xlane.f32.xlu0 %v548
      %v550 = vpop.xlane.xlu0 %549
      %v551 = vadd.f32 %v521, %v523
      %552 = vadd.xlane.f32.xlu0 %v551
      %v553 = vpop.xlane.xlu0 %552
      %v554 = vadd.f32 %v525, %v527
      %555 = vadd.xlane.f32.xlu0 %v554
      %v556 = vpop.xlane.xlu0 %555
      %v557 = vadd.f32 %v529, %v531
      %558 = vadd.xlane.f32.xlu0 %v557
      %v559 = vpop.xlane.xlu0 %558
      %v560 = vadd.f32 %v533, %v535
      %561 = vadd.xlane.f32.xlu0 %v560
      %v562 = vpop.xlane.xlu0 %561
      %v563 = vadd.f32 %v537, %v539
      %564 = vadd.xlane.f32.xlu0 %v563
      %v565 = vpop.xlane.xlu0 %564
      %v566 = vadd.f32 %v541, %v543
      %567 = vadd.xlane.f32.xlu0 %v566
      %v568 = vpop.xlane.xlu0 %567
      %v569 = vadd.f32 %v545, %v547
      %570 = vadd.xlane.f32.xlu0 %v569
      %v571 = vpop.xlane.xlu0 %570
      %v572 = vadd.f32 %v452, %v550
      %v573 = vadd.f32 %v453, %v553
      %v574 = vadd.f32 %v454, %v556
      %v575 = vadd.f32 %v455, %v559
      %v576 = vadd.f32 %v456, %v562
      %v577 = vadd.f32 %v457, %v565
      %v578 = vadd.f32 %v458, %v568
      %v579 = vadd.f32 %v459, %v571
      %vm580 = vcmask 7168
      %581 = vst.msk [vmem:[#allocation3] sm:$0xff] %vm580, %v572
      %582 = vst.msk [vmem:[#allocation3 + $0x8] sm:$0xff] %vm580, %v573
      %583 = vst.msk [vmem:[#allocation3 + $0x10] sm:$0xff] %vm580, %v574
      %584 = vst.msk [vmem:[#allocation3 + $0x18] sm:$0xff] %vm580, %v575
      %585 = vst.msk [vmem:[#allocation3 + $0x20] sm:$0xff] %vm580, %v576
      %586 = vst.msk [vmem:[#allocation3 + $0x28] sm:$0xff] %vm580, %v577
      %587 = vst.msk [vmem:[#allocation3 + $0x30] sm:$0xff] %vm580, %v578
      %588 = vst.msk [vmem:[#allocation3 + $0x38] sm:$0xff] %vm580, %v579
      %v589 = vld [vmem:[#allocation4] sm:$0xff]
      %v590 = vld [vmem:[#allocation4 + $0x8] sm:$0xff]
      %v591 = vld [vmem:[#allocation4 + $0x10] sm:$0xff]
      %v592 = vld [vmem:[#allocation4 + $0x18] sm:$0xff]
      %v593 = vld [vmem:[#allocation4 + $0x20] sm:$0xff]
      %v594 = vld [vmem:[#allocation4 + $0x28] sm:$0xff]
      %v595 = vld [vmem:[#allocation4 + $0x30] sm:$0xff]
      %v596 = vld [vmem:[#allocation4 + $0x38] sm:$0xff]
      %597 = vset.pattern.permute.xlu0 0
      %598 = vperm.xlu0 %597, %v372
      %v599 = vpop.permute.xlu0 %598
      %600 = vset.pattern.permute.xlu0 0
      %601 = vperm.xlu0 %600, %v373
      %v602 = vpop.permute.xlu0 %601
      %603 = vset.pattern.permute.xlu0 0
      %604 = vperm.xlu0 %603, %v374
      %v605 = vpop.permute.xlu0 %604
      %606 = vset.pattern.permute.xlu0 0
      %607 = vperm.xlu0 %606, %v375
      %v608 = vpop.permute.xlu0 %607
      %609 = vset.pattern.permute.xlu0 0
      %610 = vperm.xlu0 %609, %v376
      %v611 = vpop.permute.xlu0 %610
      %612 = vset.pattern.permute.xlu0 0
      %613 = vperm.xlu0 %612, %v377
      %v614 = vpop.permute.xlu0 %613
      %615 = vset.pattern.permute.xlu0 0
      %616 = vperm.xlu0 %615, %v378
      %v617 = vpop.permute.xlu0 %616
      %618 = vset.pattern.permute.xlu0 0
      %619 = vperm.xlu0 %618, %v379
      %v620 = vpop.permute.xlu0 %619
      %vm621 = vcmp.eq.s32.totalorder %v370, %v599
      %vm622 = vcmp.eq.s32.totalorder %v371, %v599
      %vm623 = vcmp.eq.s32.totalorder %v370, %v602
      %vm624 = vcmp.eq.s32.totalorder %v371, %v602
      %vm625 = vcmp.eq.s32.totalorder %v370, %v605
      %vm626 = vcmp.eq.s32.totalorder %v371, %v605
      %vm627 = vcmp.eq.s32.totalorder %v370, %v608
      %vm628 = vcmp.eq.s32.totalorder %v371, %v608
      %vm629 = vcmp.eq.s32.totalorder %v370, %v611
      %vm630 = vcmp.eq.s32.totalorder %v371, %v611
      %vm631 = vcmp.eq.s32.totalorder %v370, %v614
      %vm632 = vcmp.eq.s32.totalorder %v371, %v614
      %vm633 = vcmp.eq.s32.totalorder %v370, %v617
      %vm634 = vcmp.eq.s32.totalorder %v371, %v617
      %vm635 = vcmp.eq.s32.totalorder %v370, %v620
      %vm636 = vcmp.eq.s32.totalorder %v371, %v620
      %v637 = vsel %vm621, %v349, 0.0
      %v638 = vsel %vm622, %v350, 0.0
      %v639 = vsel %vm623, %v351, 0.0
      %v640 = vsel %vm624, %v352, 0.0
      %v641 = vsel %vm625, %v353, 0.0
      %v642 = vsel %vm626, %v354, 0.0
      %v643 = vsel %vm627, %v355, 0.0
      %v644 = vsel %vm628, %v356, 0.0
      %v645 = vsel %vm629, %v357, 0.0
      %v646 = vsel %vm630, %v358, 0.0
      %v647 = vsel %vm631, %v359, 0.0
      %v648 = vsel %vm632, %v360, 0.0
      %v649 = vsel %vm633, %v361, 0.0
      %v650 = vsel %vm634, %v362, 0.0
      %v651 = vsel %vm635, %v363, 0.0
      %v652 = vsel %vm636, %v364, 0.0
      %v653 = vadd.f32 %v637, %v638
      %654 = vadd.xlane.f32.xlu0 %v653
      %v655 = vpop.xlane.xlu0 %654
      %v656 = vadd.f32 %v639, %v640
      %657 = vadd.xlane.f32.xlu0 %v656
      %v658 = vpop.xlane.xlu0 %657
      %v659 = vadd.f32 %v641, %v642
      %660 = vadd.xlane.f32.xlu0 %v659
      %v661 = vpop.xlane.xlu0 %660
      %v662 = vadd.f32 %v643, %v644
      %663 = vadd.xlane.f32.xlu0 %v662
      %v664 = vpop.xlane.xlu0 %663
      %v665 = vadd.f32 %v645, %v646
      %666 = vadd.xlane.f32.xlu0 %v665
      %v667 = vpop.xlane.xlu0 %666
      %v668 = vadd.f32 %v647, %v648
      %669 = vadd.xlane.f32.xlu0 %v668
      %v670 = vpop.xlane.xlu0 %669
      %v671 = vadd.f32 %v649, %v650
      %672 = vadd.xlane.f32.xlu0 %v671
      %v673 = vpop.xlane.xlu0 %672
      %v674 = vadd.f32 %v651, %v652
      %675 = vadd.xlane.f32.xlu0 %v674
      %v676 = vpop.xlane.xlu0 %675
      %v677 = vadd.f32 %v589, %v655
      %v678 = vadd.f32 %v590, %v658
      %v679 = vadd.f32 %v591, %v661
      %v680 = vadd.f32 %v592, %v664
      %v681 = vadd.f32 %v593, %v667
      %v682 = vadd.f32 %v594, %v670
      %v683 = vadd.f32 %v595, %v673
      %v684 = vadd.f32 %v596, %v676
      %685 = vst.msk [vmem:[#allocation4] sm:$0xff] %vm580, %v677
      %686 = vst.msk [vmem:[#allocation4 + $0x8] sm:$0xff] %vm580, %v678
      %687 = vst.msk [vmem:[#allocation4 + $0x10] sm:$0xff] %vm580, %v679
      %688 = vst.msk [vmem:[#allocation4 + $0x18] sm:$0xff] %vm580, %v680
      %689 = vst.msk [vmem:[#allocation4 + $0x20] sm:$0xff] %vm580, %v681
      %690 = vst.msk [vmem:[#allocation4 + $0x28] sm:$0xff] %vm580, %v682
      %691 = vst.msk [vmem:[#allocation4 + $0x30] sm:$0xff] %vm580, %v683
      %692 = vst.msk [vmem:[#allocation4 + $0x38] sm:$0xff] %vm580, %v684
      %693 = vst.msk [vmem:[#allocation2] sm:$0xff] %vm580, %v412
      %694 = vst.msk [vmem:[#allocation2 + $0x8] sm:$0xff] %vm580, %v413
      %695 = vst.msk [vmem:[#allocation2 + $0x10] sm:$0xff] %vm580, %v414
      %696 = vst.msk [vmem:[#allocation2 + $0x18] sm:$0xff] %vm580, %v415
      %697 = vst.msk [vmem:[#allocation2 + $0x20] sm:$0xff] %vm580, %v416
      %698 = vst.msk [vmem:[#allocation2 + $0x28] sm:$0xff] %vm580, %v417
      %699 = vst.msk [vmem:[#allocation2 + $0x30] sm:$0xff] %vm580, %v418
      %700 = vst.msk [vmem:[#allocation2 + $0x38] sm:$0xff] %vm580, %v419
      %p701 = scmp.lt.s32.totalorder %s304, 3
      %p702 = pnand %p306, %p701
      %p703 = pneg %p702
      // Predicated region
      $region37: #{tpu_custom_call.1} parent=27 // pred_check
        _
      $region38: #{tpu_custom_call.1} parent=27 // pred_check_branch
        %705 = sbr.rel (%p702) target = $region40
      $region39: #{tpu_custom_call.1} parent=27 // pred_region
        %v706 = vld [vmem:[#allocation2] sm:$0xff]
        %v707 = vld [vmem:[#allocation2 + $0x8] sm:$0xff]
        %v708 = vld [vmem:[#allocation2 + $0x10] sm:$0xff]
        %v709 = vld [vmem:[#allocation2 + $0x18] sm:$0xff]
        %v710 = vld [vmem:[#allocation2 + $0x20] sm:$0xff]
        %v711 = vld [vmem:[#allocation2 + $0x28] sm:$0xff]
        %v712 = vld [vmem:[#allocation2 + $0x30] sm:$0xff]
        %v713 = vld [vmem:[#allocation2 + $0x38] sm:$0xff]
        %v714 = vld [vmem:[#allocation3] sm:$0xff]
        %v715 = vld [vmem:[#allocation3 + $0x8] sm:$0xff]
        %v716 = vld [vmem:[#allocation3 + $0x10] sm:$0xff]
        %v717 = vld [vmem:[#allocation3 + $0x18] sm:$0xff]
        %v718 = vld [vmem:[#allocation3 + $0x20] sm:$0xff]
        %v719 = vld [vmem:[#allocation3 + $0x28] sm:$0xff]
        %v720 = vld [vmem:[#allocation3 + $0x30] sm:$0xff]
        %v721 = vld [vmem:[#allocation3 + $0x38] sm:$0xff]
        %v722 = vlog2.pop %v714
        %v723 = vmul.f32 %v722, 0.6931472
        %v724 = vlog2.pop %v715
        %v725 = vmul.f32 %v724, 0.6931472
        %v726 = vlog2.pop %v716
        %v727 = vmul.f32 %v726, 0.6931472
        %v728 = vlog2.pop %v717
        %v729 = vmul.f32 %v728, 0.6931472
        %v730 = vlog2.pop %v718
        %v731 = vmul.f32 %v730, 0.6931472
        %v732 = vlog2.pop %v719
        %v733 = vmul.f32 %v732, 0.6931472
        %v734 = vlog2.pop %v720
        %v735 = vmul.f32 %v734, 0.6931472
        %v736 = vlog2.pop %v721
        %v737 = vmul.f32 %v736, 0.6931472
        %v738 = vadd.f32 %v706, %v723
        %v739 = vadd.f32 %v707, %v725
        %v740 = vadd.f32 %v708, %v727
        %v741 = vadd.f32 %v709, %v729
        %v742 = vadd.f32 %v710, %v731
        %v743 = vadd.f32 %v711, %v733
        %v744 = vadd.f32 %v712, %v735
        %v745 = vadd.f32 %v713, %v737
        %v746 = vld [vmem:[#allocation4] sm:$0xff]
        %v747 = vld [vmem:[#allocation4 + $0x8] sm:$0xff]
        %v748 = vld [vmem:[#allocation4 + $0x10] sm:$0xff]
        %v749 = vld [vmem:[#allocation4 + $0x18] sm:$0xff]
        %v750 = vld [vmem:[#allocation4 + $0x20] sm:$0xff]
        %v751 = vld [vmem:[#allocation4 + $0x28] sm:$0xff]
        %v752 = vld [vmem:[#allocation4 + $0x30] sm:$0xff]
        %v753 = vld [vmem:[#allocation4 + $0x38] sm:$0xff]
        %v754 = vsub.f32 %v738, %v746
        %v755 = vsub.f32 %v739, %v747
        %v756 = vsub.f32 %v740, %v748
        %v757 = vsub.f32 %v741, %v749
        %v758 = vsub.f32 %v742, %v750
        %v759 = vsub.f32 %v743, %v751
        %v760 = vsub.f32 %v744, %v752
        %v761 = vsub.f32 %v745, %v753
        %v762 = vld [vmem:[%s302] sm:$0x1]
        %v763 = vsel %vm580, %v754, 0.0
        %v764 = vsel %vm580, %v755, 0.0
        %v765 = vadd.f32 %v763, %v764
        %v766 = vsel %vm580, %v756, 0.0
        %v767 = vadd.f32 %v765, %v766
        %v768 = vsel %vm580, %v757, 0.0
        %v769 = vadd.f32 %v767, %v768
        %v770 = vsel %vm580, %v758, 0.0
        %v771 = vadd.f32 %v769, %v770
        %v772 = vsel %vm580, %v759, 0.0
        %v773 = vadd.f32 %v771, %v772
        %v774 = vsel %vm580, %v760, 0.0
        %v775 = vadd.f32 %v773, %v774
        %v776 = vsel %vm580, %v761, 0.0
        %v777 = vadd.f32 %v775, %v776
        %778 = vadd.xlane.f32.xlu0 %v777
        %v779 = vpop.xlane.xlu0 %778
        %v780 = vrot.slane %v779, 4
        %v781 = vadd.f32 %v779, %v780
        %v782 = vrot.slane %v781, 2
        %v783 = vadd.f32 %v781, %v782
        %v784 = vrot.slane %v783, 1
        %v785 = vadd.f32 %v783, %v784
        %s786 = vtos %v785
        %v787 = vstv %s786
        %v788 = vadd.f32 %v762, %v787
        %vm789 = vcmask 0
        %790 = vst.msk [vmem:[%s302] sm:$0x1] %vm789, %v788
      $region40: #{tpu_custom_call.1} parent=27 // pred_fallthru
        _
      %p791 = scmp.ge.s32.totalorder %s304, 3
      %p792 = pnand %p306, %p791
      %p793 = pneg %p792
      // Predicated region
      $region41: #{tpu_custom_call.1} parent=27 // pred_check
        _
      $region42: #{tpu_custom_call.1} parent=27 // pred_check_branch
        %795 = sbr.rel (%p792) target = $region44
      $region43: #{tpu_custom_call.1} parent=27 // pred_region
        %v796 = vld [vmem:[#allocation2] sm:$0xff]
        %v797 = vld [vmem:[#allocation2 + $0x8] sm:$0xff]
        %v798 = vld [vmem:[#allocation2 + $0x10] sm:$0xff]
        %v799 = vld [vmem:[#allocation2 + $0x18] sm:$0xff]
        %v800 = vld [vmem:[#allocation2 + $0x20] sm:$0xff]
        %v801 = vld [vmem:[#allocation2 + $0x28] sm:$0xff]
        %v802 = vld [vmem:[#allocation2 + $0x30] sm:$0xff]
        %v803 = vld [vmem:[#allocation2 + $0x38] sm:$0xff]
        %v804 = vld [vmem:[#allocation3] sm:$0xff]
        %v805 = vld [vmem:[#allocation3 + $0x8] sm:$0xff]
        %v806 = vld [vmem:[#allocation3 + $0x10] sm:$0xff]
        %v807 = vld [vmem:[#allocation3 + $0x18] sm:$0xff]
        %v808 = vld [vmem:[#allocation3 + $0x20] sm:$0xff]
        %v809 = vld [vmem:[#allocation3 + $0x28] sm:$0xff]
        %v810 = vld [vmem:[#allocation3 + $0x30] sm:$0xff]
        %v811 = vld [vmem:[#allocation3 + $0x38] sm:$0xff]
        %v812 = vlog2.pop %v804
        %v813 = vmul.f32 %v812, 0.6931472
        %v814 = vlog2.pop %v805
        %v815 = vmul.f32 %v814, 0.6931472
        %v816 = vlog2.pop %v806
        %v817 = vmul.f32 %v816, 0.6931472
        %v818 = vlog2.pop %v807
        %v819 = vmul.f32 %v818, 0.6931472
        %v820 = vlog2.pop %v808
        %v821 = vmul.f32 %v820, 0.6931472
        %v822 = vlog2.pop %v809
        %v823 = vmul.f32 %v822, 0.6931472
        %v824 = vlog2.pop %v810
        %v825 = vmul.f32 %v824, 0.6931472
        %v826 = vlog2.pop %v811
        %v827 = vmul.f32 %v826, 0.6931472
        %v828 = vadd.f32 %v796, %v813
        %v829 = vadd.f32 %v797, %v815
        %v830 = vadd.f32 %v798, %v817
        %v831 = vadd.f32 %v799, %v819
        %v832 = vadd.f32 %v800, %v821
        %v833 = vadd.f32 %v801, %v823
        %v834 = vadd.f32 %v802, %v825
        %v835 = vadd.f32 %v803, %v827
        %v836 = vld [vmem:[#allocation4] sm:$0xff]
        %v837 = vld [vmem:[#allocation4 + $0x8] sm:$0xff]
        %v838 = vld [vmem:[#allocation4 + $0x10] sm:$0xff]
        %v839 = vld [vmem:[#allocation4 + $0x18] sm:$0xff]
        %v840 = vld [vmem:[#allocation4 + $0x20] sm:$0xff]
        %v841 = vld [vmem:[#allocation4 + $0x28] sm:$0xff]
        %v842 = vld [vmem:[#allocation4 + $0x30] sm:$0xff]
        %v843 = vld [vmem:[#allocation4 + $0x38] sm:$0xff]
        %v844 = vsub.f32 %v828, %v836
        %v845 = vsub.f32 %v829, %v837
        %v846 = vsub.f32 %v830, %v838
        %v847 = vsub.f32 %v831, %v839
        %v848 = vsub.f32 %v832, %v840
        %v849 = vsub.f32 %v833, %v841
        %v850 = vsub.f32 %v834, %v842
        %v851 = vsub.f32 %v835, %v843
        %s852 = smul.u32 %s304, 64
        %v853 = vlaneseq
        %v854 = vshrl.u32 %v853, 7
        %v855 = vadd.s32 %v854, 8
        %v856 = vadd.s32 %v854, 16
        %v857 = vadd.s32 %v854, 24
        %v858 = vadd.s32 %v854, 32
        %v859 = vadd.s32 %v854, 40
        %v860 = vadd.s32 %v854, 48
        %v861 = vadd.s32 %v854, 56
        %v862 = vstv %s852
        %v863 = vadd.s32 %v862, %v854
        %v864 = vadd.s32 %v862, %v855
        %v865 = vadd.s32 %v862, %v856
        %v866 = vadd.s32 %v862, %v857
        %v867 = vadd.s32 %v862, %v858
        %v868 = vadd.s32 %v862, %v859
        %v869 = vadd.s32 %v862, %v860
        %v870 = vadd.s32 %v862, %v861
        %v871 = vld [vmem:[%s302] sm:$0x1]
        %vm872 = vcmp.lt.s32.totalorder %v863, 200
        %vm873 = vcmp.lt.s32.totalorder %v864, 200
        %vm874 = vcmp.lt.s32.totalorder %v865, 200
        %vm875 = vcmp.lt.s32.totalorder %v866, 200
        %vm876 = vcmp.lt.s32.totalorder %v867, 200
        %vm877 = vcmp.lt.s32.totalorder %v868, 200
        %vm878 = vcmp.lt.s32.totalorder %v869, 200
        %vm879 = vcmp.lt.s32.totalorder %v870, 200
        %v880 = vsel %vm872, %v844, 0.0
        %v881 = vsel %vm873, %v845, 0.0
        %v882 = vsel %vm874, %v846, 0.0
        %v883 = vsel %vm875, %v847, 0.0
        %v884 = vsel %vm876, %v848, 0.0
        %v885 = vsel %vm877, %v849, 0.0
        %v886 = vsel %vm878, %v850, 0.0
        %v887 = vsel %vm879, %v851, 0.0
        %v888 = vsel %vm580, %v880, 0.0
        %v889 = vsel %vm580, %v881, 0.0
        %v890 = vadd.f32 %v888, %v889
        %v891 = vsel %vm580, %v882, 0.0
        %v892 = vadd.f32 %v890, %v891
        %v893 = vsel %vm580, %v883, 0.0
        %v894 = vadd.f32 %v892, %v893
        %v895 = vsel %vm580, %v884, 0.0
        %v896 = vadd.f32 %v894, %v895
        %v897 = vsel %vm580, %v885, 0.0
        %v898 = vadd.f32 %v896, %v897
        %v899 = vsel %vm580, %v886, 0.0
        %v900 = vadd.f32 %v898, %v899
        %v901 = vsel %vm580, %v887, 0.0
        %v902 = vadd.f32 %v900, %v901
        %903 = vadd.xlane.f32.xlu0 %v902
        %v904 = vpop.xlane.xlu0 %903
        %v905 = vrot.slane %v904, 4
        %v906 = vadd.f32 %v904, %v905
        %v907 = vrot.slane %v906, 2
        %v908 = vadd.f32 %v906, %v907
        %v909 = vrot.slane %v908, 1
        %v910 = vadd.f32 %v908, %v909
        %s911 = vtos %v910
        %v912 = vstv %s911
        %v913 = vadd.f32 %v871, %v912
        %vm914 = vcmask 0
        %915 = vst.msk [vmem:[%s302] sm:$0x1] %vm914, %v913
      $region44: #{tpu_custom_call.1} parent=27 // pred_fallthru
        _
      %p916 = scmp.lt.s32.totalorder %s18, 1
      %s917 = scalar_select %p916, %s18, 1
      %s918 = scalar_lea.vmem %s2, %s917
      // Predicated region
      $region45: #{tpu_custom_call.1} parent=27 // pred_check
        %p919 = pneg %p120
      $region46: #{tpu_custom_call.1} parent=27 // pred_check_branch
        %921 = sbr.rel (%p919) target = $region48
      $region47: #{tpu_custom_call.1} parent=27 // pred_region
        _
      $region48: #{tpu_custom_call.1} parent=27 // pred_fallthru
        _
    $region28: #{tpu_custom_call.1} parent=5 // pred_fallthru
      _
    %p922 = scmp.le.s32.totalorder 2, %s8
    // Predicated region
    $region49: #{tpu_custom_call.1} parent=5 // pred_check
      %p923 = pneg %p922
    $region50: #{tpu_custom_call.1} parent=5 // pred_check_branch
      %925 = sbr.rel (%p923) target = $region52
    $region51: #{tpu_custom_call.1} parent=5 // pred_region
      %s926 = ssub.s32 %s8, 2
      // Predicated region
      $region53: #{tpu_custom_call.1} parent=51 // pred_check
        %p927 = pneg %p126
      $region54: #{tpu_custom_call.1} parent=51 // pred_check_branch
        %929 = sbr.rel (%p927) target = $region56
      $region55: #{tpu_custom_call.1} parent=51 // pred_region
        %p930 = scmp.lt.s32.totalorder %s21, 1
        %s931 = scalar_select %p930, %s21, 1
        %s932 = scalar_lea.vmem %s2, %s931
      $region56: #{tpu_custom_call.1} parent=51 // pred_fallthru
        _
    $region52: #{tpu_custom_call.1} parent=5 // pred_fallthru
      _
  $region6: #{tpu_custom_call.1} parent=0 // loop_footer
    %s12 = sadd.s32 1, %s8
  $region7: #{tpu_custom_call.1} parent=0 // loop_footer_branch
    %7 = sbr.rel target = $region3
  $region8: #{tpu_custom_call.1} parent=0 // loop_exit
    _

</llo_original>
